<compile_context>
chip_gen: v6e
topology: v6e:2x2x1
jax: 0.10.0
libtpu: 0.0.40
codegen_flags: <defaults>
</compile_context>

<pallas_src>
import jax
import jax.numpy as jnp
from jax.experimental import pallas as pl
from jax.experimental.pallas import tpu as pltpu


def _zpool2d_kernel(x_ref, mu_ref, o_ref):
    # x_ref: (tile_r, tile_hw), mu_ref: (tile_r, 1) -> cheap lane broadcast.
    o_ref[...] = (x_ref[...] - mu_ref[...]).astype(o_ref.dtype)


def _target_block_bytes():
    """Generation-aware per-block byte budget."""
    kind = ""
    try:
        kind = jax.devices()[0].device_kind.lower()
    except Exception:
        pass
    if "v6" in kind or "v7" in kind:
        return 6 * 1024 * 1024
    return 4 * 1024 * 1024


def _choose_tiles(R, HW, dtype, target_bytes):
    """Pick (tile_r, tile_hw) obeying the (8,128) rule.

    Preference order:
      1. Full HW rows (contiguous HBM slab per block); tile the row axis.
      2. Only if one minimal row-group already exceeds the budget, tile the
         lane axis in multiples of 128 (cdiv grid handles any remainder).
    """
    itemsize = jnp.dtype(dtype).itemsize
    sub = 8 * max(1, 4 // itemsize)          # sublane packing: 8 f32, 16 bf16, 32 int8
    min_r = R if R < sub else sub            # smallest legal row tile
    row_bytes = HW * itemsize

    if min_r * row_bytes <= target_bytes:
        tile_hw = HW                         # full rows -> one contiguous DMA per block
    else:
        # Rows are too long even for a minimal row-group: tile the lane axis.
        tile_hw = max(128, (target_bytes // (min_r * itemsize)) // 128 * 128)
        tile_hw = min(tile_hw, HW)

    cap_r = max(1, target_bytes // (tile_hw * itemsize))
    if cap_r >= R or R < sub:
        tile_r = R                           # full row axis (legal: equals array dim)
    else:
        tile_r = max(sub, (cap_r // sub) * sub)

    # Megacore: if everything fits a single block but the problem is non-trivial,
    # split rows so both TensorCores (v7x) get a parallel block to work on.
    if tile_r == R and tile_hw == HW and R >= 2 * sub and R * HW * itemsize > (1 << 20):
        tile_r = (((R + 1) // 2) + sub - 1) // sub * sub

    return tile_r, tile_hw


def zpool2d(X, mu):
    """Pallas implementation of ZPool2D.forward(X, mu) -> X - mu.

    X:  (N, C, H, W)
    mu: (1, C, 1, 1)  (broadcast against X, as in PyTorch)
    """
    N, C, H, W = X.shape
    assert mu.shape == (1, C, 1, 1), f"expected mu shape (1,{C},1,1), got {mu.shape}"

    R, HW = N * C, H * W
    x2 = X.reshape(R, HW)                                   # free for contiguous NCHW
    # Tiny (N*C, 1) per-row mu so in-kernel broadcast is a pure lane replicate.
    mu_rows = jnp.broadcast_to(mu.reshape(1, C, 1), (N, C, 1)).reshape(R, 1).astype(X.dtype)

    tile_r, tile_hw = _choose_tiles(R, HW, X.dtype, _target_block_bytes())
    grid = (pl.cdiv(R, tile_r), pl.cdiv(HW, tile_hw))       # cdiv: no silent remainder drop

    out = pl.pallas_call(
        _zpool2d_kernel,
        out_shape=jax.ShapeDtypeStruct((R, HW), X.dtype),
        grid_spec=pltpu.PrefetchScalarGridSpec(
            num_scalar_prefetch=0,
            grid=grid,
            in_specs=[
                pl.BlockSpec((tile_r, tile_hw), lambda r, s: (r, s)),
                # mu: follows the row tile, invariant along the HW axis
                # (Pallas skips the re-DMA while the block index is unchanged).
                pl.BlockSpec((tile_r, 1), lambda r, s: (r, 0)),
            ],
            out_specs=pl.BlockSpec((tile_r, tile_hw), lambda r, s: (r, s)),
        ),
        compiler_params=pltpu.CompilerParams(
            dimension_semantics=("parallel", "parallel"),
            vmem_limit_bytes=32 * 1024 * 1024,
        ),
    )(x2, mu_rows)

    return out.reshape(N, C, H, W)


if __name__ == "__main__":
    key = jax.random.PRNGKey(0)
    kx, kmu = jax.random.split(key)

    N, C, H, W = 2, 4, 16, 16
    X = jax.random.normal(kx, (N, C, H, W), dtype=jnp.float32)
    mu = jax.random.normal(kmu, (1, C, 1, 1), dtype=jnp.float32)

    out = zpool2d(X, mu)
    out = jax.block_until_ready(out)

    # Reference check against plain JAX broadcasting subtraction.
    ref = X - mu
    assert out.shape == ref.shape and out.dtype == ref.dtype
    assert jnp.allclose(out, ref, atol=1e-6, rtol=1e-6)

    print("KERNEL_OK")
</pallas_src>

<mosaic_0001>
module attributes {stable_mosaic.version = 11 : i64} {
  func.func @_zpool2d_kernel(%arg0: i32, %arg1: i32, %arg2: memref<8x256xf32, #tpu.memory_space<vmem>>, %arg3: memref<8x1xf32, #tpu.memory_space<vmem>>, %arg4: memref<8x256xf32, #tpu.memory_space<vmem>>) attributes {dimension_semantics = [#tpu.dimension_semantics<parallel>, #tpu.dimension_semantics<parallel>], iteration_bounds = array<i64: 1, 1>, scalar_prefetch = 0 : i64, scratch_operands = 0 : i64, tpu.core_type = #tpu.core_type<tc>, window_params = [{transform_indices = @transform_0, window_bounds = array<i64: 8, 256>}, {transform_indices = @transform_1, window_bounds = array<i64: 8, 1>}, {transform_indices = @transform_2, window_bounds = array<i64: 8, 256>}]} {
    %c0 = arith.constant 0 : index
    %c0_0 = arith.constant 0 : index
    %0 = vector.load %arg2[%c0, %c0_0] : memref<8x256xf32, #tpu.memory_space<vmem>>, vector<8x256xf32>
    %c0_1 = arith.constant 0 : index
    %c0_2 = arith.constant 0 : index
    %1 = vector.load %arg3[%c0_1, %c0_2] : memref<8x1xf32, #tpu.memory_space<vmem>>, vector<8x1xf32>
    %2 = vector.broadcast %1 : vector<8x1xf32> to vector<8x256xf32>
    %3 = arith.subf %0, %2 : vector<8x256xf32>
    %c0_3 = arith.constant 0 : index
    %c0_4 = arith.constant 0 : index
    %4 = vector.load %arg4[%c0_3, %c0_4] : memref<8x256xf32, #tpu.memory_space<vmem>>, vector<8x256xf32>
    tpu.vector_store %arg4[%c0_3, %c0_4], %3 {strides = array<i32>} : memref<8x256xf32, #tpu.memory_space<vmem>>, vector<8x256xf32>,
    return
  }
  func.func @transform_0(%arg0: i32, %arg1: i32) -> (i32, i32) {
    %c0_i32 = arith.constant 0 : i32
    return %arg0, %arg1 : i32, i32
  }
  func.func @transform_1(%arg0: i32, %arg1: i32) -> (i32, i32) {
    %c0_i32 = arith.constant 0 : i32
    %c0_i32_0 = arith.constant 0 : i32
    return %arg0, %c0_i32 : i32, i32
  }
  func.func @transform_2(%arg0: i32, %arg1: i32) -> (i32, i32) {
    %c0_i32 = arith.constant 0 : i32
    return %arg0, %arg1 : i32, i32
  }
}

</mosaic_0001>

<llo_original>
// kernel: tpu_custom_call.1
$region0: #{tpu_custom_call.1}
  #allocation0 [shape = 'u32[]', space=smem, size = 0x4, offset = 0x4, fixed_abs, tag = 'smem constant byte address 0x4 - core index']
  #allocation1 [shape = 'u32[144,128]{1,0:T(1,128)}', space=vmem, size = 0x12000, scoped, tag = 'internal scratch']
  %s0 = inlined_call_operand.hbm [shape: f32[8,256], index: 0, kind: input, shape index: {}]
  %s1 = inlined_call_operand.vmem [shape: f32[8,1], index: 1, kind: input, shape index: {}]
  %s2 = inlined_call_operand.hbm [shape: f32[8,256], index: 2, kind: output, shape index: {}]
  %s3 = sld [smem:[#allocation0]]
  $region22: #{tpu_custom_call.1} parent=0
    _
  %s5 = ssub.s32 1, %s3
  %s6 = scalar_select 0, %s5, %s3
  $region1: #{tpu_custom_call.1} parent=0
    #allocation2 [shape = 'u8[8192]{0}', space=vmem, size = 0x2000, scoped, tag = 'input window, operand 0, single buffered']
    #allocation3 [shape = 's32[1]{0}', space=sflag, size = 0x4, scoped, tag = 'scoped memory for tpu_custom_call.1']
    #allocation4 [shape = 's32[1]{0}', space=sflag, size = 0x4, scoped, tag = 'scoped memory for tpu_custom_call.1']
    #allocation5 [shape = 'u8[8192]{0}', space=vmem, size = 0x2000, scoped, tag = 'output window, operand 0, single buffered']
    %7 = vsyncpa [#allocation3], 0
    %8 = vsyncpa [#allocation4], 0
    // Predicated region
    $region2: #{tpu_custom_call.1} parent=1 // pred_check
      _
    $region3: #{tpu_custom_call.1} parent=1 // pred_check_branch
      %10 = sbr.rel (0) target = $region5
    $region4: #{tpu_custom_call.1} parent=1 // pred_region
      %s12 = ssub.s32 256, 256
      %13 = vsyncadd [#allocation3], %s12
      %s15 = sshll.u32 [#allocation2], 4
      %s16 = int_to_ptr.vmem [resolvable:$true] %s15
      %18 = dma.hbm_to_vmem [thread:$0]  %s0, 256, %s16, [#allocation3]
    $region5: #{tpu_custom_call.1} parent=1 // pred_fallthru
      _
    // Predicated region
    $region6: #{tpu_custom_call.1} parent=1 // pred_check
      _
    $region7: #{tpu_custom_call.1} parent=1 // pred_check_branch
      %20 = sbr.rel (0) target = $region9
    $region8: #{tpu_custom_call.1} parent=1 // pred_region
      _
    $region9: #{tpu_custom_call.1} parent=1 // pred_fallthru
      _
    // Predicated region
    $region10: #{tpu_custom_call.1} parent=1 // pred_check
      _
    $region11: #{tpu_custom_call.1} parent=1 // pred_check_branch
      %22 = sbr.rel (0) target = $region13
    $region12: #{tpu_custom_call.1} parent=1 // pred_region
      %23 = dma.done [#allocation3], 256
    $region13: #{tpu_custom_call.1} parent=1 // pred_fallthru
      _
    %v24 = vld [vmem:[#allocation2] sm:$0xff]
    %v25 = vld [vmem:[#allocation2 + $0x8] sm:$0xff]
    %v26 = vld [vmem:[%s1] sm:$0xff]
    %28 = vset.pattern.permute.xlu0 0
    %29 = vperm.xlu0 %28, %v26
    %v30 = vpop.permute.xlu0 %29
    %v32 = vsub.f32 %v24, %v30
    %v33 = vsub.f32 %v25, %v30
    %34 = vst [vmem:[#allocation5] sm:$0xff] %v32
    %35 = vst [vmem:[#allocation5 + $0x8] sm:$0xff] %v33
    // Predicated region
    $region14: #{tpu_custom_call.1} parent=1 // pred_check
      _
    $region15: #{tpu_custom_call.1} parent=1 // pred_check_branch
      %37 = sbr.rel (0) target = $region17
    $region16: #{tpu_custom_call.1} parent=1 // pred_region
      %s39 = ssub.s32 256, 256
      %40 = vsyncadd [#allocation4], %s39
      %s42 = sshll.u32 [#allocation5], 4
      %s43 = int_to_ptr.vmem [resolvable:$true] %s42
      %45 = dma.vmem_to_hbm [thread:$0]  %s43, 256, %s2, [#allocation4]
    $region17: #{tpu_custom_call.1} parent=1 // pred_fallthru
      _
    // Predicated region
    $region18: #{tpu_custom_call.1} parent=1 // pred_check
      _
    $region19: #{tpu_custom_call.1} parent=1 // pred_check_branch
      %47 = sbr.rel (0) target = $region21
    $region20: #{tpu_custom_call.1} parent=1 // pred_region
      %48 = dma.done [#allocation4], 256
    $region21: #{tpu_custom_call.1} parent=1 // pred_fallthru
      _
    %49 = vsyncpa [#allocation3], 1
    %50 = vsyncpa [#allocation4], 1

</llo_original>
